<compile_context>
chip_gen: v5e
topology: v5e:2x2
jax: 0.10.0
libtpu: 0.0.40
codegen_flags: <defaults>
</compile_context>

<pallas_src>
import functools
import math

import jax
import jax.numpy as jnp
from jax.experimental import pallas as pl
from jax.experimental.pallas import tpu as pltpu

MID_DIM = 64          # hidden width of the module (nn.Linear(in_dim, 64))
HID_PAD = 128         # hidden width padded to one full lane group
BN_EPS = 0.001        # module uses nn.BatchNorm1d(64, eps=0.001)
LANE = 128
ROW_ALIGN = 16        # bf16 packs 16 rows per vreg


def _round_up(x, m):
    return (x + m - 1) // m * m


# --------------------------------------------------------------------------- #
# Kernels
# --------------------------------------------------------------------------- #
def _fused_kernel(x_ref, w1t_ref, gamma_ref, beta_ref, w2t_ref, b2_ref, o_ref,
                  *, inv_n):
    """Single-block path: fc1 -> batch stats -> BN -> ReLU -> fc2, all in VMEM.

    fc1's bias cancels in training-mode BatchNorm, so it never appears here.
    """
    h = jnp.dot(x_ref[...].astype(jnp.bfloat16), w1t_ref[...],
                preferred_element_type=jnp.float32)
    mean = jnp.sum(h, axis=0, keepdims=True) * inv_n
    var = jnp.maximum(jnp.sum(h * h, axis=0, keepdims=True) * inv_n - mean * mean,
                      0.0)
    scale = gamma_ref[...] * jax.lax.rsqrt(var + BN_EPS)
    shift = beta_ref[...] - mean * scale
    a = jnp.maximum(h * scale + shift, 0.0)
    y = jnp.dot(a.astype(jnp.bfloat16), w2t_ref[...],
                preferred_element_type=jnp.float32) + b2_ref[...]
    o_ref[...] = y.astype(o_ref.dtype)


def _fc1_stats_kernel(x_ref, w1t_ref, s_ref, s2_ref, *, n_valid, tile_rows):
    """Pass 1: h = x @ W1t (bf16 MXU, f32 acc); per-tile sum / sum-of-squares.

    Only the (possibly) partial last tile pays for row masking.
    """
    i = pl.program_id(0)
    h = jnp.dot(x_ref[...].astype(jnp.bfloat16), w1t_ref[...],
                preferred_element_type=jnp.float32)
    is_full = (i + 1) * tile_rows <= n_valid

    @pl.when(is_full)
    def _():
        s_ref[...] = jnp.sum(h, axis=0, keepdims=True)[None]
        s2_ref[...] = jnp.sum(h * h, axis=0, keepdims=True)[None]

    @pl.when(jnp.logical_not(is_full))
    def _():
        # Rows past N hold whatever was in the pipeline buffer; use a select
        # (not a multiply) so garbage / NaN cannot leak into the statistics.
        row = jax.lax.broadcasted_iota(jnp.int32, h.shape, 0)
        hm = jnp.where(row < (n_valid - i * tile_rows), h, 0.0)
        s_ref[...] = jnp.sum(hm, axis=0, keepdims=True)[None]
        s2_ref[...] = jnp.sum(hm * hm, axis=0, keepdims=True)[None]


def _norm_fc2_kernel(x_ref, w1t_ref, scale_ref, shift_ref, w2t_ref, b2_ref, o_ref):
    """Pass 2: recompute fc1 (bias folded away), fused BN scale/shift, ReLU, fc2."""
    h = jnp.dot(x_ref[...].astype(jnp.bfloat16), w1t_ref[...],
                preferred_element_type=jnp.float32)
    a = jnp.maximum(h * scale_ref[...] + shift_ref[...], 0.0)
    y = jnp.dot(a.astype(jnp.bfloat16), w2t_ref[...],
                preferred_element_type=jnp.float32) + b2_ref[...]
    o_ref[...] = y.astype(o_ref.dtype)


# --------------------------------------------------------------------------- #
# Wrapper
# --------------------------------------------------------------------------- #
def _prep_weights(params, out_pad):
    """bf16 MXU operands, hidden padded to 128 lanes, out padded to `out_pad`."""
    out_dim = params["w2"].shape[0]
    w1t = jnp.pad(params["w1"].T,
                  ((0, 0), (0, HID_PAD - MID_DIM))).astype(jnp.bfloat16)
    gamma = jnp.pad(params["gamma"], (0, HID_PAD - MID_DIM)).reshape(1, HID_PAD)
    beta = jnp.pad(params["beta"], (0, HID_PAD - MID_DIM)).reshape(1, HID_PAD)
    w2t = jnp.pad(params["w2"].T,
                  ((0, HID_PAD - MID_DIM), (0, out_pad - out_dim))).astype(jnp.bfloat16)
    b2 = jnp.pad(params["b2"], (0, out_pad - out_dim)).reshape(1, out_pad)
    return w1t, gamma, beta, w2t, b2


def _auto_tile_rows(n_rows, in_dim, out_pad):
    """Size row tiles so the double-buffered f32 x / y streams plus the f32
    hidden intermediate land around ~16 MiB (amortizes the ~0.35us per-step
    overhead yet fits v7x's 64 MiB VMEM), while keeping >= 2 tiles so the
    'parallel' grid axis can use both v7x TensorCores."""
    per_row = 2 * 4 * in_dim + 2 * 4 * out_pad + 6 * HID_PAD
    tn = (16 * 1024 * 1024) // max(per_row, 1)
    tn = max(512, min(tn, 8192))
    tn = min(tn, max(512, _round_up(pl.cdiv(n_rows, 2), ROW_ALIGN)))
    return tn


def predict_decoder(x, params, *, tile_rows=None, force_streamed=False):
    """x: (N, in_dim) float32 -> (N, out_dim) float32 (training-mode BatchNorm)."""
    N, C = x.shape
    out_dim = params["w2"].shape[0]

    # ---- small/medium N: single fused kernel ---------------------------------
    fused_bytes = N * (4 * C + 8 * HID_PAD + 4 * out_dim)
    if not force_streamed and N <= 4096 and fused_bytes <= 6 * 1024 * 1024:
        w1t, gamma, beta, w2t, b2 = _prep_weights(params, out_dim)
        full = lambda shape: pl.BlockSpec(shape, lambda i: (0,) * len(shape))
        return pl.pallas_call(
            functools.partial(_fused_kernel, inv_n=1.0 / N),
            out_shape=jax.ShapeDtypeStruct((N, out_dim), x.dtype),
            grid=(1,),
            in_specs=[full((N, C)), full((C, HID_PAD)), full((1, HID_PAD)),
                      full((1, HID_PAD)), full((HID_PAD, out_dim)),
                      full((1, out_dim))],
            out_specs=full((N, out_dim)),
            compiler_params=pltpu.CompilerParams(
                vmem_limit_bytes=32 * 1024 * 1024),
        )(x, w1t, gamma, beta, w2t, b2)

    # ---- large N: two streamed passes over row tiles --------------------------
    op = _round_up(out_dim, LANE)                       # lane-dense output width
    w1t, gamma, beta, w2t, b2 = _prep_weights(params, op)

    if tile_rows is None:
        tile_rows = _auto_tile_rows(N, C, op)
    tn = _round_up(min(tile_rows, _round_up(N, ROW_ALIGN)), ROW_ALIGN)
    nt = pl.cdiv(N, tn)

    const = lambda shape: pl.BlockSpec(shape, lambda i: (0,) * len(shape))
    cparams = pltpu.CompilerParams(
        dimension_semantics=("parallel",),              # megacore row split (v7x)
        vmem_limit_bytes=48 * 1024 * 1024)              # > v5e's 16 MiB default,
                                                        # < v7x's 64 MiB physical

    # pass 1: fc1 (no bias) + per-tile partial statistics
    s_part, s2_part = pl.pallas_call(
        functools.partial(_fc1_stats_kernel, n_valid=N, tile_rows=tn),
        out_shape=(jax.ShapeDtypeStruct((nt, 1, HID_PAD), jnp.float32),
                   jax.ShapeDtypeStruct((nt, 1, HID_PAD), jnp.float32)),
        grid=(nt,),
        in_specs=[pl.BlockSpec((tn, C), lambda i: (i, 0)),
                  const((C, HID_PAD))],
        out_specs=[pl.BlockSpec((1, 1, HID_PAD), lambda i: (i, 0, 0)),
                   pl.BlockSpec((1, 1, HID_PAD), lambda i: (i, 0, 0))],
        compiler_params=cparams,
    )(x, w1t)

    # Tiny (nt, 128) reductions + BN scale/shift folding stay in XLA.
    # fc1's bias cancels under training-mode BN, so it never appears.
    mean0 = jnp.sum(s_part[:, 0, :], axis=0) / N
    var = jnp.maximum(jnp.sum(s2_part[:, 0, :], axis=0) / N - mean0 * mean0, 0.0)
    scale1 = gamma[0] * jax.lax.rsqrt(var + BN_EPS)
    shift1 = beta[0] - mean0 * scale1
    scale = scale1.reshape(1, HID_PAD)
    shift = shift1.reshape(1, HID_PAD)

    # pass 2: fused BN + ReLU + fc2, lane-dense (op = k*128) output
    # TODO(synk): for very large in_dim (>~256) pass 1 should also emit h as
    # bf16 and pass 2 should consume it instead of recomputing fc1.
    y = pl.pallas_call(
        _norm_fc2_kernel,
        out_shape=jax.ShapeDtypeStruct((N, op), x.dtype),
        grid=(nt,),
        in_specs=[pl.BlockSpec((tn, C), lambda i: (i, 0)),
                  const((C, HID_PAD)),
                  const((1, HID_PAD)),
                  const((1, HID_PAD)),
                  const((HID_PAD, op)),
                  const((1, op))],
        out_specs=pl.BlockSpec((tn, op), lambda i: (i, 0)),
        compiler_params=cparams,
    )(x, w1t, scale, shift, w2t, b2)

    return y if op == out_dim else y[:, :out_dim]


# --------------------------------------------------------------------------- #
# Parameters / reference
# --------------------------------------------------------------------------- #
def init_params(key, in_dim, out_dim):
    """Deterministic init mimicking PyTorch nn.Linear / nn.BatchNorm1d defaults."""
    k1, k2, k3, k4 = jax.random.split(key, 4)
    bound1 = 1.0 / math.sqrt(in_dim)
    bound2 = 1.0 / math.sqrt(MID_DIM)
    return {
        "w1": jax.random.uniform(k1, (MID_DIM, in_dim), jnp.float32, -bound1, bound1),
        "b1": jax.random.uniform(k2, (MID_DIM,), jnp.float32, -bound1, bound1),
        "gamma": jnp.ones((MID_DIM,), jnp.float32),
        "beta": jnp.zeros((MID_DIM,), jnp.float32),
        "w2": jax.random.uniform(k3, (out_dim, MID_DIM), jnp.float32, -bound2, bound2),
        "b2": jax.random.uniform(k4, (out_dim,), jnp.float32, -bound2, bound2),
    }


def _reference(x, params):
    """Pure-JAX reference with the same bf16-matmul / f32-accumulate numerics."""
    h = jnp.dot(x.astype(jnp.bfloat16), params["w1"].T.astype(jnp.bfloat16),
                preferred_element_type=jnp.float32) + params["b1"]
    mean = jnp.mean(h, axis=0)
    var = jnp.mean((h - mean) ** 2, axis=0)           # biased (training) variance
    hn = (h - mean) * jax.lax.rsqrt(var + BN_EPS) * params["gamma"] + params["beta"]
    a = jnp.maximum(hn, 0.0)
    y = jnp.dot(a.astype(jnp.bfloat16), params["w2"].T.astype(jnp.bfloat16),
                preferred_element_type=jnp.float32) + params["b2"]
    return y


if __name__ == "__main__":
    # Small shapes consistent with the module: N=200 rows, in_dim=32, out_dim=48.
    N, C, OUT = 200, 32, 48
    key = jax.random.PRNGKey(0)
    kx, kp = jax.random.split(key)
    x = jax.random.normal(kx, (N, C), jnp.float32)
    params = init_params(kp, C, OUT)

    y_ref = _reference(x, params)

    # 1) fused single-kernel path (default dispatch for small N)
    y_fused = jax.block_until_ready(predict_decoder(x, params))
    assert y_fused.shape == (N, OUT), y_fused.shape
    err_f = float(jnp.max(jnp.abs(y_fused - y_ref)))
    assert jnp.allclose(y_fused, y_ref, atol=2e-3, rtol=2e-3), err_f

    # 2) streamed two-pass path (forced; tile=64 -> 4 row tiles, a partial last
    #    tile with masked stats, and the lane-padded output slab)
    y_str = jax.block_until_ready(
        predict_decoder(x, params, tile_rows=64, force_streamed=True))
    assert y_str.shape == (N, OUT), y_str.shape
    err_s = float(jnp.max(jnp.abs(y_str - y_ref)))
    assert jnp.allclose(y_str, y_ref, atol=2e-3, rtol=2e-3), err_s

    print("KERNEL_OK")
</pallas_src>

<mosaic_0001>
module attributes {stable_mosaic.version = 11 : i64} {
  func.func @_fused_kernel(%arg0: i32, %arg1: memref<200x32xf32, #tpu.memory_space<vmem>>, %arg2: memref<32x128xbf16, #tpu.memory_space<vmem>>, %arg3: memref<1x128xf32, #tpu.memory_space<vmem>>, %arg4: memref<1x128xf32, #tpu.memory_space<vmem>>, %arg5: memref<128x48xbf16, #tpu.memory_space<vmem>>, %arg6: memref<1x48xf32, #tpu.memory_space<vmem>>, %arg7: memref<200x48xf32, #tpu.memory_space<vmem>>) attributes {dimension_semantics = [#tpu.dimension_semantics<arbitrary>], iteration_bounds = array<i64: 1>, scalar_prefetch = 0 : i64, scratch_operands = 0 : i64, tpu.core_type = #tpu.core_type<tc>, window_params = [{pipeline_mode = #tpu.pipeline_mode<synchronous>, transform_indices = @transform_0, window_bounds = array<i64: 200, 32>}, {pipeline_mode = #tpu.pipeline_mode<synchronous>, transform_indices = @transform_1, window_bounds = array<i64: 32, 128>}, {pipeline_mode = #tpu.pipeline_mode<synchronous>, transform_indices = @transform_2, window_bounds = array<i64: 1, 128>}, {pipeline_mode = #tpu.pipeline_mode<synchronous>, transform_indices = @transform_3, window_bounds = array<i64: 1, 128>}, {pipeline_mode = #tpu.pipeline_mode<synchronous>, transform_indices = @transform_4, window_bounds = array<i64: 128, 48>}, {pipeline_mode = #tpu.pipeline_mode<synchronous>, transform_indices = @transform_5, window_bounds = array<i64: 1, 48>}, {pipeline_mode = #tpu.pipeline_mode<synchronous>, transform_indices = @transform_6, window_bounds = array<i64: 200, 48>}]} {
    %c0 = arith.constant 0 : index
    %c0_0 = arith.constant 0 : index
    %0 = vector.load %arg1[%c0, %c0_0] : memref<200x32xf32, #tpu.memory_space<vmem>>, vector<200x32xf32>
    %1 = arith.truncf %0 : vector<200x32xf32> to vector<200x32xbf16>
    %c0_1 = arith.constant 0 : index
    %c0_2 = arith.constant 0 : index
    %2 = vector.load %arg2[%c0_1, %c0_2] : memref<32x128xbf16, #tpu.memory_space<vmem>>, vector<32x128xbf16>
    %cst = arith.constant dense<0.000000e+00> : vector<200x128xf32>
    %3 = tpu.matmul %1, %2, %cst {dimension_numbers = #tpu.dot_dimension_numbers<[1], [0], [0], [1], [0, 0, 1, 1], [], []>} : vector<200x32xbf16>, vector<32x128xbf16>, vector<200x128xf32> -> vector<200x128xf32>
    %cst_3 = arith.constant dense<0.000000e+00> : vector<128xf32>
    %4 = vector.multi_reduction <add>, %3, %cst_3 [0] : vector<200x128xf32> to vector<128xf32>
    %5 = vector.shape_cast %4 : vector<128xf32> to vector<1x128xf32>
    %cst_4 = arith.constant 5.000000e-03 : f32
    %6 = vector.broadcast %cst_4 : f32 to vector<1x128xf32>
    %7 = arith.mulf %5, %6 : vector<1x128xf32>
    %8 = arith.mulf %3, %3 : vector<200x128xf32>
    %cst_5 = arith.constant dense<0.000000e+00> : vector<128xf32>
    %9 = vector.multi_reduction <add>, %8, %cst_5 [0] : vector<200x128xf32> to vector<128xf32>
    %10 = vector.shape_cast %9 : vector<128xf32> to vector<1x128xf32>
    %cst_6 = arith.constant 5.000000e-03 : f32
    %11 = vector.broadcast %cst_6 : f32 to vector<1x128xf32>
    %12 = arith.mulf %10, %11 : vector<1x128xf32>
    %13 = arith.mulf %7, %7 : vector<1x128xf32>
    %14 = arith.subf %12, %13 : vector<1x128xf32>
    %cst_7 = arith.constant 0.000000e+00 : f32
    %15 = vector.broadcast %cst_7 : f32 to vector<1x128xf32>
    %16 = arith.maximumf %14, %15 : vector<1x128xf32>
    %c0_8 = arith.constant 0 : index
    %c0_9 = arith.constant 0 : index
    %17 = vector.load %arg3[%c0_8, %c0_9] : memref<1x128xf32, #tpu.memory_space<vmem>>, vector<1x128xf32>
    %cst_10 = arith.constant 1.000000e-03 : f32
    %18 = vector.broadcast %cst_10 : f32 to vector<1x128xf32>
    %19 = arith.addf %16, %18 : vector<1x128xf32>
    %20 = math.rsqrt %19 : vector<1x128xf32>
    %21 = arith.mulf %17, %20 : vector<1x128xf32>
    %c0_11 = arith.constant 0 : index
    %c0_12 = arith.constant 0 : index
    %22 = vector.load %arg4[%c0_11, %c0_12] : memref<1x128xf32, #tpu.memory_space<vmem>>, vector<1x128xf32>
    %23 = arith.mulf %7, %21 : vector<1x128xf32>
    %24 = arith.subf %22, %23 : vector<1x128xf32>
    %25 = vector.broadcast %21 : vector<1x128xf32> to vector<200x128xf32>
    %26 = arith.mulf %3, %25 : vector<200x128xf32>
    %27 = vector.broadcast %24 : vector<1x128xf32> to vector<200x128xf32>
    %28 = arith.addf %26, %27 : vector<200x128xf32>
    %cst_13 = arith.constant 0.000000e+00 : f32
    %29 = vector.broadcast %cst_13 : f32 to vector<200x128xf32>
    %30 = arith.maximumf %28, %29 : vector<200x128xf32>
    %31 = arith.truncf %30 : vector<200x128xf32> to vector<200x128xbf16>
    %c0_14 = arith.constant 0 : index
    %c0_15 = arith.constant 0 : index
    %32 = vector.load %arg5[%c0_14, %c0_15] : memref<128x48xbf16, #tpu.memory_space<vmem>>, vector<128x48xbf16>
    %cst_16 = arith.constant dense<0.000000e+00> : vector<200x48xf32>
    %33 = tpu.matmul %31, %32, %cst_16 {dimension_numbers = #tpu.dot_dimension_numbers<[1], [0], [0], [1], [0, 0, 1, 1], [], []>} : vector<200x128xbf16>, vector<128x48xbf16>, vector<200x48xf32> -> vector<200x48xf32>
    %c0_17 = arith.constant 0 : index
    %c0_18 = arith.constant 0 : index
    %34 = vector.load %arg6[%c0_17, %c0_18] : memref<1x48xf32, #tpu.memory_space<vmem>>, vector<1x48xf32>
    %35 = vector.broadcast %34 : vector<1x48xf32> to vector<200x48xf32>
    %36 = arith.addf %33, %35 : vector<200x48xf32>
    %c0_19 = arith.constant 0 : index
    %c0_20 = arith.constant 0 : index
    %37 = vector.load %arg7[%c0_19, %c0_20] : memref<200x48xf32, #tpu.memory_space<vmem>>, vector<200x48xf32>
    tpu.vector_store %arg7[%c0_19, %c0_20], %36 {strides = array<i32>} : memref<200x48xf32, #tpu.memory_space<vmem>>, vector<200x48xf32>,
    return
  }
  func.func @transform_0(%arg0: i32) -> (i32, i32) {
    %c0_i32 = arith.constant 0 : i32
    %c0_i32_0 = arith.constant 0 : i32
    %c0_i32_1 = arith.constant 0 : i32
    return %c0_i32, %c0_i32_0 : i32, i32
  }
  func.func @transform_1(%arg0: i32) -> (i32, i32) {
    %c0_i32 = arith.constant 0 : i32
    %c0_i32_0 = arith.constant 0 : i32
    %c0_i32_1 = arith.constant 0 : i32
    return %c0_i32, %c0_i32_0 : i32, i32
  }
  func.func @transform_2(%arg0: i32) -> (i32, i32) {
    %c0_i32 = arith.constant 0 : i32
    %c0_i32_0 = arith.constant 0 : i32
    %c0_i32_1 = arith.constant 0 : i32
    return %c0_i32, %c0_i32_0 : i32, i32
  }
  func.func @transform_3(%arg0: i32) -> (i32, i32) {
    %c0_i32 = arith.constant 0 : i32
    %c0_i32_0 = arith.constant 0 : i32
    %c0_i32_1 = arith.constant 0 : i32
    return %c0_i32, %c0_i32_0 : i32, i32
  }
  func.func @transform_4(%arg0: i32) -> (i32, i32) {
    %c0_i32 = arith.constant 0 : i32
    %c0_i32_0 = arith.constant 0 : i32
    %c0_i32_1 = arith.constant 0 : i32
    return %c0_i32, %c0_i32_0 : i32, i32
  }
  func.func @transform_5(%arg0: i32) -> (i32, i32) {
    %c0_i32 = arith.constant 0 : i32
    %c0_i32_0 = arith.constant 0 : i32
    %c0_i32_1 = arith.constant 0 : i32
    return %c0_i32, %c0_i32_0 : i32, i32
  }
  func.func @transform_6(%arg0: i32) -> (i32, i32) {
    %c0_i32 = arith.constant 0 : i32
    %c0_i32_0 = arith.constant 0 : i32
    %c0_i32_1 = arith.constant 0 : i32
    return %c0_i32, %c0_i32_0 : i32, i32
  }
}

</mosaic_0001>

<llo_original>
// kernel: tpu_custom_call.1
$region0: #{tpu_custom_call.1}
  #allocation0 [shape = 'u32[]', space=smem, size = 0x4, offset = 0x4, fixed_abs, tag = 'smem constant byte address 0x4 - core index']
  #allocation1 [shape = 'u32[72,128]{1,0:T(1,128)}', space=vmem, size = 0x9000, scoped, tag = 'internal scratch']
  %s0 = inlined_call_operand.vmem [shape: f32[200,32], index: 0, kind: input, shape index: {}]
  %s1 = inlined_call_operand.vmem [shape: bf16[32,128], index: 1, kind: input, shape index: {}]
  %s2 = inlined_call_operand.vmem [shape: f32[1,128], index: 2, kind: input, shape index: {}]
  %s3 = inlined_call_operand.vmem [shape: f32[1,128], index: 3, kind: input, shape index: {}]
  %s4 = inlined_call_operand.vmem [shape: bf16[128,48], index: 4, kind: input, shape index: {}]
  %s5 = inlined_call_operand.vmem [shape: f32[1,48], index: 5, kind: input, shape index: {}]
  %s6 = inlined_call_operand.vmem [shape: f32[200,48], index: 6, kind: output, shape index: {}]
  %s7 = sld [smem:[#allocation0]]
  $region34: #{tpu_custom_call.1} parent=0
    _
  %s9 = ssub.s32 1, %s7
  %s10 = scalar_select 0, %s9, %s7
  // Predicated region
  $region2: #{tpu_custom_call.1} parent=0 // pred_check
    _
  $region3: #{tpu_custom_call.1} parent=0 // pred_check_branch
    %12 = sbr.rel (0) target = $region5
  $region4: #{tpu_custom_call.1} parent=0 // pred_region
    _
  $region5: #{tpu_custom_call.1} parent=0 // pred_fallthru
    _
  // Predicated region
  $region6: #{tpu_custom_call.1} parent=0 // pred_check
    _
  $region7: #{tpu_custom_call.1} parent=0 // pred_check_branch
    %14 = sbr.rel (0) target = $region9
  $region8: #{tpu_custom_call.1} parent=0 // pred_region
    _
  $region9: #{tpu_custom_call.1} parent=0 // pred_fallthru
    _
  // Predicated region
  $region10: #{tpu_custom_call.1} parent=0 // pred_check
    _
  $region11: #{tpu_custom_call.1} parent=0 // pred_check_branch
    %16 = sbr.rel (0) target = $region13
  $region12: #{tpu_custom_call.1} parent=0 // pred_region
    _
  $region13: #{tpu_custom_call.1} parent=0 // pred_fallthru
    _
  // Predicated region
  $region14: #{tpu_custom_call.1} parent=0 // pred_check
    _
  $region15: #{tpu_custom_call.1} parent=0 // pred_check_branch
    %18 = sbr.rel (0) target = $region17
  $region16: #{tpu_custom_call.1} parent=0 // pred_region
    _
  $region17: #{tpu_custom_call.1} parent=0 // pred_fallthru
    _
  // Predicated region
  $region18: #{tpu_custom_call.1} parent=0 // pred_check
    _
  $region19: #{tpu_custom_call.1} parent=0 // pred_check_branch
    %20 = sbr.rel (0) target = $region21
  $region20: #{tpu_custom_call.1} parent=0 // pred_region
    _
  $region21: #{tpu_custom_call.1} parent=0 // pred_fallthru
    _
  // Predicated region
  $region22: #{tpu_custom_call.1} parent=0 // pred_check
    _
  $region23: #{tpu_custom_call.1} parent=0 // pred_check_branch
    %22 = sbr.rel (0) target = $region25
  $region24: #{tpu_custom_call.1} parent=0 // pred_region
    _
  $region25: #{tpu_custom_call.1} parent=0 // pred_fallthru
    _
  %v24 = vld [vmem:[%s0] sm:$0xff]
  %v25 = vld [vmem:[%s0 + $0x8] sm:$0xff]
  %v26 = vld [vmem:[%s0 + $0x10] sm:$0xff]
  %v27 = vld [vmem:[%s0 + $0x18] sm:$0xff]
  %v28 = vld [vmem:[%s0 + $0x20] sm:$0xff]
  %v29 = vld [vmem:[%s0 + $0x28] sm:$0xff]
  %v30 = vld [vmem:[%s0 + $0x30] sm:$0xff]
  %v31 = vld [vmem:[%s0 + $0x38] sm:$0xff]
  %v32 = vld [vmem:[%s0 + $0x40] sm:$0xff]
  %v33 = vld [vmem:[%s0 + $0x48] sm:$0xff]
  %v34 = vld [vmem:[%s0 + $0x50] sm:$0xff]
  %v35 = vld [vmem:[%s0 + $0x58] sm:$0xff]
  %v36 = vld [vmem:[%s0 + $0x60] sm:$0xff]
  %v37 = vld [vmem:[%s0 + $0x68] sm:$0xff]
  %v38 = vld [vmem:[%s0 + $0x70] sm:$0xff]
  %v39 = vld [vmem:[%s0 + $0x78] sm:$0xff]
  %v40 = vld [vmem:[%s0 + $0x80] sm:$0xff]
  %v41 = vld [vmem:[%s0 + $0x88] sm:$0xff]
  %v42 = vld [vmem:[%s0 + $0x90] sm:$0xff]
  %v43 = vld [vmem:[%s0 + $0x98] sm:$0xff]
  %v44 = vld [vmem:[%s0 + $0xa0] sm:$0xff]
  %v45 = vld [vmem:[%s0 + $0xa8] sm:$0xff]
  %v46 = vld [vmem:[%s0 + $0xb0] sm:$0xff]
  %v47 = vld [vmem:[%s0 + $0xb8] sm:$0xff]
  %v48 = vld [vmem:[%s0 + $0xc0] sm:$0xff]
  %v49 = vpack.c.bf16 %v25, %v24
  %v50 = vpack.c.bf16 %v27, %v26
  %v51 = vpack.c.bf16 %v29, %v28
  %v52 = vpack.c.bf16 %v31, %v30
  %v53 = vpack.c.bf16 %v33, %v32
  %v54 = vpack.c.bf16 %v35, %v34
  %v55 = vpack.c.bf16 %v37, %v36
  %v56 = vpack.c.bf16 %v39, %v38
  %v57 = vpack.c.bf16 %v41, %v40
  %v58 = vpack.c.bf16 %v43, %v42
  %v59 = vpack.c.bf16 %v45, %v44
  %v60 = vpack.c.bf16 %v47, %v46
  %v61 = vpack.c.bf16 %v48, %v48
  %v62 = vld [vmem:[%s1] sm:$0xf]
  %v63 = vld [vmem:[%s1 + $0x4] sm:$0xf]
  %v64 = vld [vmem:[%s1 + $0x8] sm:$0xf]
  %v65 = vld [vmem:[%s1 + $0xc] sm:$0xf]
  %v70 = vunpack.c.l.b16 %v62
  %v71 = vunpack.c.l.b16 %v63
  %v72 = vunpack.c.l.b16 %v64
  %v73 = vunpack.c.l.b16 %v65
  %v74 = vpack.c.b16 %v71, %v70
  %v75 = vpack.c.b16 %v73, %v72
  %vm78 = vcmask 261120
  %v80 = vsel %vm78, %v49, 0
  %v83 = vsel %vm78, %v50, 0
  %v86 = vsel %vm78, %v51, 0
  %v89 = vsel %vm78, %v52, 0
  %v92 = vsel %vm78, %v53, 0
  %v95 = vsel %vm78, %v54, 0
  %v98 = vsel %vm78, %v55, 0
  %v101 = vsel %vm78, %v56, 0
  %v104 = vsel %vm78, %v57, 0
  %v107 = vsel %vm78, %v58, 0
  %v110 = vsel %vm78, %v59, 0
  %v113 = vsel %vm78, %v60, 0
  %v116 = vsel %vm78, %v61, 0
  %118 = vmatpush.bf16.msra.mxu0 0
  %119 = vmatpush.bf16.msra.mxu0 0
  %120 = vmatpush.bf16.msra.mxu0 0
  %121 = vmatpush.bf16.msra.mxu0 0
  %122 = vmatpush.bf16.msra.mxu0 0
  %123 = vmatpush.bf16.msra.mxu0 0
  %124 = vmatpush.bf16.msra.mxu0 %v75
  %125 = vmatpush.bf16.msra.mxu0 %v74
  %126 = vmatmul.bf16.gmra.mxu0 %v80
  %v127 = vpop.f32.mrf.mxu0
  %v128 = vadd.f32 0.0, %v127
  %v129 = vpop.f32.mrf.mxu0
  %v130 = vadd.f32 0.0, %v129
  %131 = vmatmul.bf16.gmra.mxu0 %v83
  %v132 = vpop.f32.mrf.mxu0
  %v133 = vadd.f32 0.0, %v132
  %v134 = vpop.f32.mrf.mxu0
  %v135 = vadd.f32 0.0, %v134
  %136 = vmatmul.bf16.gmra.mxu0 %v86
  %v137 = vpop.f32.mrf.mxu0
  %v138 = vadd.f32 0.0, %v137
  %v139 = vpop.f32.mrf.mxu0
  %v140 = vadd.f32 0.0, %v139
  %141 = vmatmul.bf16.gmra.mxu0 %v89
  %v142 = vpop.f32.mrf.mxu0
  %v143 = vadd.f32 0.0, %v142
  %v144 = vpop.f32.mrf.mxu0
  %v145 = vadd.f32 0.0, %v144
  %146 = vmatmul.bf16.gmra.mxu0 %v92
  %v147 = vpop.f32.mrf.mxu0
  %v148 = vadd.f32 0.0, %v147
  %v149 = vpop.f32.mrf.mxu0
  %v150 = vadd.f32 0.0, %v149
  %151 = vmatmul.bf16.gmra.mxu0 %v95
  %v152 = vpop.f32.mrf.mxu0
  %v153 = vadd.f32 0.0, %v152
  %v154 = vpop.f32.mrf.mxu0
  %v155 = vadd.f32 0.0, %v154
  %156 = vmatmul.bf16.gmra.mxu0 %v98
  %v157 = vpop.f32.mrf.mxu0
  %v158 = vadd.f32 0.0, %v157
  %v159 = vpop.f32.mrf.mxu0
  %v160 = vadd.f32 0.0, %v159
  %161 = vmatmul.bf16.gmra.mxu0 %v101
  %v162 = vpop.f32.mrf.mxu0
  %v163 = vadd.f32 0.0, %v162
  %v164 = vpop.f32.mrf.mxu0
  %v165 = vadd.f32 0.0, %v164
  %166 = vmatmul.bf16.gmra.mxu0 %v104
  %v167 = vpop.f32.mrf.mxu0
  %v168 = vadd.f32 0.0, %v167
  %v169 = vpop.f32.mrf.mxu0
  %v170 = vadd.f32 0.0, %v169
  %171 = vmatmul.bf16.gmra.mxu0 %v107
  %v172 = vpop.f32.mrf.mxu0
  %v173 = vadd.f32 0.0, %v172
  %v174 = vpop.f32.mrf.mxu0
  %v175 = vadd.f32 0.0, %v174
  %176 = vmatmul.bf16.gmra.mxu0 %v110
  %v177 = vpop.f32.mrf.mxu0
  %v178 = vadd.f32 0.0, %v177
  %v179 = vpop.f32.mrf.mxu0
  %v180 = vadd.f32 0.0, %v179
  %181 = vmatmul.bf16.gmra.mxu0 %v113
  %v182 = vpop.f32.mrf.mxu0
  %v183 = vadd.f32 0.0, %v182
  %v184 = vpop.f32.mrf.mxu0
  %v185 = vadd.f32 0.0, %v184
  %186 = vmatmul.bf16.gmra.mxu0 %v116
  %v187 = vpop.f32.mrf.mxu0
  %v188 = vadd.f32 0.0, %v187
  %v189 = vpop.f32.mrf.mxu0
  %190 = vdwg.mxu0
  %v191 = vadd.f32 %v128, %v130
  %v192 = vadd.f32 %v191, %v133
  %v193 = vadd.f32 %v192, %v135
  %v194 = vadd.f32 %v193, %v138
  %v195 = vadd.f32 %v194, %v140
  %v196 = vadd.f32 %v195, %v143
  %v197 = vadd.f32 %v196, %v145
  %v198 = vadd.f32 %v197, %v148
  %v199 = vadd.f32 %v198, %v150
  %v200 = vadd.f32 %v199, %v153
  %v201 = vadd.f32 %v200, %v155
  %v202 = vadd.f32 %v201, %v158
  %v203 = vadd.f32 %v202, %v160
  %v204 = vadd.f32 %v203, %v163
  %v205 = vadd.f32 %v204, %v165
  %v206 = vadd.f32 %v205, %v168
  %v207 = vadd.f32 %v206, %v170
  %v208 = vadd.f32 %v207, %v173
  %v209 = vadd.f32 %v208, %v175
  %v210 = vadd.f32 %v209, %v178
  %v211 = vadd.f32 %v210, %v180
  %v212 = vadd.f32 %v211, %v183
  %v213 = vadd.f32 %v212, %v185
  %v214 = vadd.f32 %v213, %v188
  %v215 = vrot.slane %v214, 4
  %v216 = vadd.f32 %v214, %v215
  %v217 = vrot.slane %v216, 2
  %v218 = vadd.f32 %v216, %v217
  %v219 = vrot.slane %v218, 1
  %v220 = vadd.f32 %v218, %v219
  %v221 = vmul.f32 %v220, 0.005
  %v222 = vmul.f32 %v128, %v128
  %v223 = vmul.f32 %v130, %v130
  %v224 = vmul.f32 %v133, %v133
  %v225 = vmul.f32 %v135, %v135
  %v226 = vmul.f32 %v138, %v138
  %v227 = vmul.f32 %v140, %v140
  %v228 = vmul.f32 %v143, %v143
  %v229 = vmul.f32 %v145, %v145
  %v230 = vmul.f32 %v148, %v148
  %v231 = vmul.f32 %v150, %v150
  %v232 = vmul.f32 %v153, %v153
  %v233 = vmul.f32 %v155, %v155
  %v234 = vmul.f32 %v158, %v158
  %v235 = vmul.f32 %v160, %v160
  %v236 = vmul.f32 %v163, %v163
  %v237 = vmul.f32 %v165, %v165
  %v238 = vmul.f32 %v168, %v168
  %v239 = vmul.f32 %v170, %v170
  %v240 = vmul.f32 %v173, %v173
  %v241 = vmul.f32 %v175, %v175
  %v242 = vmul.f32 %v178, %v178
  %v243 = vmul.f32 %v180, %v180
  %v244 = vmul.f32 %v183, %v183
  %v245 = vmul.f32 %v185, %v185
  %v246 = vmul.f32 %v188, %v188
  %v247 = vadd.f32 %v222, %v223
  %v248 = vadd.f32 %v247, %v224
  %v249 = vadd.f32 %v248, %v225
  %v250 = vadd.f32 %v249, %v226
  %v251 = vadd.f32 %v250, %v227
  %v252 = vadd.f32 %v251, %v228
  %v253 = vadd.f32 %v252, %v229
  %v254 = vadd.f32 %v253, %v230
  %v255 = vadd.f32 %v254, %v231
  %v256 = vadd.f32 %v255, %v232
  %v257 = vadd.f32 %v256, %v233
  %v258 = vadd.f32 %v257, %v234
  %v259 = vadd.f32 %v258, %v235
  %v260 = vadd.f32 %v259, %v236
  %v261 = vadd.f32 %v260, %v237
  %v262 = vadd.f32 %v261, %v238
  %v263 = vadd.f32 %v262, %v239
  %v264 = vadd.f32 %v263, %v240
  %v265 = vadd.f32 %v264, %v241
  %v266 = vadd.f32 %v265, %v242
  %v267 = vadd.f32 %v266, %v243
  %v268 = vadd.f32 %v267, %v244
  %v269 = vadd.f32 %v268, %v245
  %v270 = vadd.f32 %v269, %v246
  %v271 = vrot.slane %v270, 4
  %v272 = vadd.f32 %v270, %v271
  %v273 = vrot.slane %v272, 2
  %v274 = vadd.f32 %v272, %v273
  %v275 = vrot.slane %v274, 1
  %v276 = vadd.f32 %v274, %v275
  %v277 = vmul.f32 %v276, 0.005
  %v278 = vmul.f32 %v221, %v221
  %v279 = vsub.f32 %v277, %v278
  %v280 = vmax.f32 %v279, 0.0
  %v281 = vld [vmem:[%s2] sm:$0x1]
  %v282 = vadd.f32 %v280, 0.001
  %v283 = vrsqrt.pop %v282
  %v284 = vmul.f32 %v283, %v282
  %v285 = vmul.f32 %v284, %v283
  %v286 = vmul.f32 0.5, %v285
  %v287 = vsub.f32 1.5, %v286
  %v288 = vmul.f32 %v283, %v287
  %vm289 = vweird.f32 %v282
  %vm290 = vweird.f32 %v283
  %vm291 = vmor %vm289, %vm290
  %v292 = vsel %vm291, %v283, %v288
  %v293 = vmul.f32 %v281, %v292
  %v294 = vld [vmem:[%s3] sm:$0x1]
  %v295 = vmul.f32 %v221, %v293
  %v296 = vsub.f32 %v294, %v295
  %v298 = vperm.slane %v293, 0
  %v300 = vmul.f32 %v128, %v298
  %v301 = vmul.f32 %v130, %v298
  %v302 = vmul.f32 %v133, %v298
  %v303 = vmul.f32 %v135, %v298
  %v304 = vmul.f32 %v138, %v298
  %v305 = vmul.f32 %v140, %v298
  %v306 = vmul.f32 %v143, %v298
  %v307 = vmul.f32 %v145, %v298
  %v308 = vmul.f32 %v148, %v298
  %v309 = vmul.f32 %v150, %v298
  %v310 = vmul.f32 %v153, %v298
  %v311 = vmul.f32 %v155, %v298
  %v312 = vmul.f32 %v158, %v298
  %v313 = vmul.f32 %v160, %v298
  %v314 = vmul.f32 %v163, %v298
  %v315 = vmul.f32 %v165, %v298
  %v316 = vmul.f32 %v168, %v298
  %v317 = vmul.f32 %v170, %v298
  %v318 = vmul.f32 %v173, %v298
  %v319 = vmul.f32 %v175, %v298
  %v320 = vmul.f32 %v178, %v298
  %v321 = vmul.f32 %v180, %v298
  %v322 = vmul.f32 %v183, %v298
  %v323 = vmul.f32 %v185, %v298
  %v324 = vmul.f32 %v188, %v298
  %v326 = vperm.slane %v296, 0
  %v328 = vadd.f32 %v300, %v326
  %v329 = vadd.f32 %v301, %v326
  %v330 = vadd.f32 %v302, %v326
  %v331 = vadd.f32 %v303, %v326
  %v332 = vadd.f32 %v304, %v326
  %v333 = vadd.f32 %v305, %v326
  %v334 = vadd.f32 %v306, %v326
  %v335 = vadd.f32 %v307, %v326
  %v336 = vadd.f32 %v308, %v326
  %v337 = vadd.f32 %v309, %v326
  %v338 = vadd.f32 %v310, %v326
  %v339 = vadd.f32 %v311, %v326
  %v340 = vadd.f32 %v312, %v326
  %v341 = vadd.f32 %v313, %v326
  %v342 = vadd.f32 %v314, %v326
  %v343 = vadd.f32 %v315, %v326
  %v344 = vadd.f32 %v316, %v326
  %v345 = vadd.f32 %v317, %v326
  %v346 = vadd.f32 %v318, %v326
  %v347 = vadd.f32 %v319, %v326
  %v348 = vadd.f32 %v320, %v326
  %v349 = vadd.f32 %v321, %v326
  %v350 = vadd.f32 %v322, %v326
  %v351 = vadd.f32 %v323, %v326
  %v352 = vadd.f32 %v324, %v326
  %v353 = vmax.f32 %v328, 0.0
  %v354 = vmax.f32 %v329, 0.0
  %v355 = vmax.f32 %v330, 0.0
  %v356 = vmax.f32 %v331, 0.0
  %v357 = vmax.f32 %v332, 0.0
  %v358 = vmax.f32 %v333, 0.0
  %v359 = vmax.f32 %v334, 0.0
  %v360 = vmax.f32 %v335, 0.0
  %v361 = vmax.f32 %v336, 0.0
  %v362 = vmax.f32 %v337, 0.0
  %v363 = vmax.f32 %v338, 0.0
  %v364 = vmax.f32 %v339, 0.0
  %v365 = vmax.f32 %v340, 0.0
  %v366 = vmax.f32 %v341, 0.0
  %v367 = vmax.f32 %v342, 0.0
  %v368 = vmax.f32 %v343, 0.0
  %v369 = vmax.f32 %v344, 0.0
  %v370 = vmax.f32 %v345, 0.0
  %v371 = vmax.f32 %v346, 0.0
  %v372 = vmax.f32 %v347, 0.0
  %v373 = vmax.f32 %v348, 0.0
  %v374 = vmax.f32 %v349, 0.0
  %v375 = vmax.f32 %v350, 0.0
  %v376 = vmax.f32 %v351, 0.0
  %v377 = vmax.f32 %v352, 0.0
  %v378 = vpack.c.bf16 %v354, %v353
  %v379 = vpack.c.bf16 %v356, %v355
  %v380 = vpack.c.bf16 %v358, %v357
  %v381 = vpack.c.bf16 %v360, %v359
  %v382 = vpack.c.bf16 %v362, %v361
  %v383 = vpack.c.bf16 %v364, %v363
  %v384 = vpack.c.bf16 %v366, %v365
  %v385 = vpack.c.bf16 %v368, %v367
  %v386 = vpack.c.bf16 %v370, %v369
  %v387 = vpack.c.bf16 %v372, %v371
  %v388 = vpack.c.bf16 %v374, %v373
  %v389 = vpack.c.bf16 %v376, %v375
  %v390 = vpack.c.bf16 %v377, %v377
  %v391 = vld [vmem:[%s4] sm:$0xf]
  %v392 = vld [vmem:[%s4 + $0x4] sm:$0xf]
  %v393 = vld [vmem:[%s4 + $0x8] sm:$0xf]
  %v394 = vld [vmem:[%s4 + $0xc] sm:$0xf]
  %v395 = vld [vmem:[%s4 + $0x10] sm:$0xf]
  %v396 = vld [vmem:[%s4 + $0x14] sm:$0xf]
  %v397 = vld [vmem:[%s4 + $0x18] sm:$0xf]
  %v398 = vld [vmem:[%s4 + $0x1c] sm:$0xf]
  %v399 = vld [vmem:[%s4 + $0x20] sm:$0xf]
  %v400 = vld [vmem:[%s4 + $0x24] sm:$0xf]
  %v401 = vld [vmem:[%s4 + $0x28] sm:$0xf]
  %v402 = vld [vmem:[%s4 + $0x2c] sm:$0xf]
  %v403 = vld [vmem:[%s4 + $0x30] sm:$0xf]
  %v404 = vld [vmem:[%s4 + $0x34] sm:$0xf]
  %v405 = vld [vmem:[%s4 + $0x38] sm:$0xf]
  %v406 = vld [vmem:[%s4 + $0x3c] sm:$0xf]
  %v407 = vld [vmem:[%s5] sm:$0x1]
  %v409 = vperm.slane %v407, 0
  %v427 = vunpack.c.l.b16 %v391
  %v428 = vunpack.c.l.b16 %v392
  %v429 = vunpack.c.l.b16 %v393
  %v430 = vunpack.c.l.b16 %v394
  %v431 = vunpack.c.l.b16 %v395
  %v432 = vunpack.c.l.b16 %v396
  %v433 = vunpack.c.l.b16 %v397
  %v434 = vunpack.c.l.b16 %v398
  %v435 = vunpack.c.l.b16 %v399
  %v436 = vunpack.c.l.b16 %v400
  %v437 = vunpack.c.l.b16 %v401
  %v438 = vunpack.c.l.b16 %v402
  %v439 = vunpack.c.l.b16 %v403
  %v440 = vunpack.c.l.b16 %v404
  %v441 = vunpack.c.l.b16 %v405
  %v442 = vunpack.c.l.b16 %v406
  %v443 = vpack.c.b16 %v428, %v427
  %v444 = vpack.c.b16 %v430, %v429
  %v445 = vpack.c.b16 %v432, %v431
  %v446 = vpack.c.b16 %v434, %v433
  %v447 = vpack.c.b16 %v436, %v435
  %v448 = vpack.c.b16 %v438, %v437
  %v449 = vpack.c.b16 %v440, %v439
  %v450 = vpack.c.b16 %v442, %v441
  %459 = vmatpush.bf16.msra.mxu0 %v450
  %460 = vmatpush.bf16.msra.mxu0 %v449
  %461 = vmatpush.bf16.msra.mxu0 %v448
  %462 = vmatpush.bf16.msra.mxu0 %v447
  %463 = vmatpush.bf16.msra.mxu0 %v446
  %464 = vmatpush.bf16.msra.mxu0 %v445
  %465 = vmatpush.bf16.msra.mxu0 %v444
  %466 = vmatpush.bf16.msra.mxu0 %v443
  %467 = vmatmul.bf16.gmra.mxu0 %v378
  %v468 = vpop.f32.mrf.mxu0
  %v469 = vadd.f32 %v409, %v468
  %v470 = vpop.f32.mrf.mxu0
  %v471 = vadd.f32 %v409, %v470
  %472 = vmatmul.bf16.gmra.mxu0 %v379
  %v473 = vpop.f32.mrf.mxu0
  %v474 = vadd.f32 %v409, %v473
  %v475 = vpop.f32.mrf.mxu0
  %v476 = vadd.f32 %v409, %v475
  %477 = vmatmul.bf16.gmra.mxu0 %v380
  %v478 = vpop.f32.mrf.mxu0
  %v479 = vadd.f32 %v409, %v478
  %v480 = vpop.f32.mrf.mxu0
  %v481 = vadd.f32 %v409, %v480
  %482 = vmatmul.bf16.gmra.mxu0 %v381
  %v483 = vpop.f32.mrf.mxu0
  %v484 = vadd.f32 %v409, %v483
  %v485 = vpop.f32.mrf.mxu0
  %v486 = vadd.f32 %v409, %v485
  %487 = vmatmul.bf16.gmra.mxu0 %v382
  %v488 = vpop.f32.mrf.mxu0
  %v489 = vadd.f32 %v409, %v488
  %v490 = vpop.f32.mrf.mxu0
  %v491 = vadd.f32 %v409, %v490
  %492 = vmatmul.bf16.gmra.mxu0 %v383
  %v493 = vpop.f32.mrf.mxu0
  %v494 = vadd.f32 %v409, %v493
  %v495 = vpop.f32.mrf.mxu0
  %v496 = vadd.f32 %v409, %v495
  %497 = vmatmul.bf16.gmra.mxu0 %v384
  %v498 = vpop.f32.mrf.mxu0
  %v499 = vadd.f32 %v409, %v498
  %v500 = vpop.f32.mrf.mxu0
  %v501 = vadd.f32 %v409, %v500
  %502 = vmatmul.bf16.gmra.mxu0 %v385
  %v503 = vpop.f32.mrf.mxu0
  %v504 = vadd.f32 %v409, %v503
  %v505 = vpop.f32.mrf.mxu0
  %v506 = vadd.f32 %v409, %v505
  %507 = vmatmul.bf16.gmra.mxu0 %v386
  %v508 = vpop.f32.mrf.mxu0
  %v509 = vadd.f32 %v409, %v508
  %v510 = vpop.f32.mrf.mxu0
  %v511 = vadd.f32 %v409, %v510
  %512 = vmatmul.bf16.gmra.mxu0 %v387
  %v513 = vpop.f32.mrf.mxu0
  %v514 = vadd.f32 %v409, %v513
  %v515 = vpop.f32.mrf.mxu0
  %v516 = vadd.f32 %v409, %v515
  %517 = vmatmul.bf16.gmra.mxu0 %v388
  %v518 = vpop.f32.mrf.mxu0
  %v519 = vadd.f32 %v409, %v518
  %v520 = vpop.f32.mrf.mxu0
  %v521 = vadd.f32 %v409, %v520
  %522 = vmatmul.bf16.gmra.mxu0 %v389
  %v523 = vpop.f32.mrf.mxu0
  %v524 = vadd.f32 %v409, %v523
  %v525 = vpop.f32.mrf.mxu0
  %v526 = vadd.f32 %v409, %v525
  %527 = vmatmul.bf16.gmra.mxu0 %v390
  %v528 = vpop.f32.mrf.mxu0
  %v529 = vadd.f32 %v409, %v528
  %v530 = vpop.f32.mrf.mxu0
  %531 = vdwg.mxu0
  %vm532 = vcmask 392192
  %533 = vst.msk [vmem:[%s6] sm:$0xff] %vm532, %v469
  %534 = vst.msk [vmem:[%s6 + $0x8] sm:$0xff] %vm532, %v471
  %535 = vst.msk [vmem:[%s6 + $0x10] sm:$0xff] %vm532, %v474
  %536 = vst.msk [vmem:[%s6 + $0x18] sm:$0xff] %vm532, %v476
  %537 = vst.msk [vmem:[%s6 + $0x20] sm:$0xff] %vm532, %v479
  %538 = vst.msk [vmem:[%s6 + $0x28] sm:$0xff] %vm532, %v481
  %539 = vst.msk [vmem:[%s6 + $0x30] sm:$0xff] %vm532, %v484
  %540 = vst.msk [vmem:[%s6 + $0x38] sm:$0xff] %vm532, %v486
  %541 = vst.msk [vmem:[%s6 + $0x40] sm:$0xff] %vm532, %v489
  %542 = vst.msk [vmem:[%s6 + $0x48] sm:$0xff] %vm532, %v491
  %543 = vst.msk [vmem:[%s6 + $0x50] sm:$0xff] %vm532, %v494
  %544 = vst.msk [vmem:[%s6 + $0x58] sm:$0xff] %vm532, %v496
  %545 = vst.msk [vmem:[%s6 + $0x60] sm:$0xff] %vm532, %v499
  %546 = vst.msk [vmem:[%s6 + $0x68] sm:$0xff] %vm532, %v501
  %547 = vst.msk [vmem:[%s6 + $0x70] sm:$0xff] %vm532, %v504
  %548 = vst.msk [vmem:[%s6 + $0x78] sm:$0xff] %vm532, %v506
  %549 = vst.msk [vmem:[%s6 + $0x80] sm:$0xff] %vm532, %v509
  %550 = vst.msk [vmem:[%s6 + $0x88] sm:$0xff] %vm532, %v511
  %551 = vst.msk [vmem:[%s6 + $0x90] sm:$0xff] %vm532, %v514
  %552 = vst.msk [vmem:[%s6 + $0x98] sm:$0xff] %vm532, %v516
  %553 = vst.msk [vmem:[%s6 + $0xa0] sm:$0xff] %vm532, %v519
  %554 = vst.msk [vmem:[%s6 + $0xa8] sm:$0xff] %vm532, %v521
  %555 = vst.msk [vmem:[%s6 + $0xb0] sm:$0xff] %vm532, %v524
  %556 = vst.msk [vmem:[%s6 + $0xb8] sm:$0xff] %vm532, %v526
  %557 = vst.msk [vmem:[%s6 + $0xc0] sm:$0xff] %vm532, %v529
  // Predicated region
  $region26: #{tpu_custom_call.1} parent=0 // pred_check
    _
  $region27: #{tpu_custom_call.1} parent=0 // pred_check_branch
    %559 = sbr.rel (0) target = $region29
  $region28: #{tpu_custom_call.1} parent=0 // pred_region
    _
  $region29: #{tpu_custom_call.1} parent=0 // pred_fallthru
    _
  // Predicated region
  $region30: #{tpu_custom_call.1} parent=0 // pred_check
    _
  $region31: #{tpu_custom_call.1} parent=0 // pred_check_branch
    %561 = sbr.rel (0) target = $region33
  $region32: #{tpu_custom_call.1} parent=0 // pred_region
    _
  $region33: #{tpu_custom_call.1} parent=0 // pred_fallthru
    _

</llo_original>
